<compile_context>
chip_gen: v7x
topology: tpu7x:2x2x1
jax: 0.10.0
libtpu: 0.0.40
codegen_flags: <defaults>
</compile_context>

<pallas_src>
import functools

import jax
import jax.numpy as jnp
import numpy as np
from jax.experimental import pallas as pl
from jax.experimental.pallas import tpu as pltpu


# ----------------------------------------------------------------------------
# Static model dimensions (synthetic miniature).
# ----------------------------------------------------------------------------
HIDDEN = 32
VOCAB = 64
RANK = 4
CHANNELS = 3
IMG = 16
PATCH = 8


def _vmem_spec():
    """Gridless whole-array VMEM operand (no pipelining for a single step)."""
    return pl.BlockSpec(memory_space=pltpu.MemorySpace.VMEM)


# ------------------------------ kernel ------------------------------------- #
def fused_forward_kernel(
    pix_ref,     # (B, C*IMG*IMG)   bf16  flattened pixel values (no transpose needed)
    ids_ref,     # (B*S, 1)         i32   input ids (labels derived in-kernel)
    wfold_ref,   # (C*IMG*IMG, H)   bf16  patch-embed weight with unfold+mean-pool folded in
    wslab_ref,   # (max(V,H), 128)  bf16  [w_mlp | w_lm | tok_emb] packed lane-dense
    aux_ref,     # (H, 128)         f32   [lora_A | lora_B | b_vision | b_mlp] packed
    out_ref,     # (1, 128)         f32   [total, lm_loss, l1_reg, 0, ...]
    *,
    batch,
    seq,
    hidden,
    vocab,
    rank,
    lora_scale,
    lambda_l1,
):
    f32, bf16 = jnp.float32, jnp.bfloat16
    n = batch * seq

    # ---- unpack lane-dense parameter slabs (static sub-window loads) ------
    w_mlp = wslab_ref[0:hidden, 0:hidden]                               # (H,H) bf16
    w_lm = wslab_ref[0:hidden, hidden:hidden + vocab]                   # (H,V) bf16
    tok_emb = wslab_ref[0:vocab, hidden + vocab:2 * hidden + vocab]     # (V,H) bf16

    la = aux_ref[0:hidden, 0:rank]                                      # (H,r) f32
    lb = aux_ref[0:rank, rank:rank + hidden]                            # (r,H) f32
    b_v = aux_ref[rank:rank + 1, rank:rank + hidden]                    # (1,H) f32
    b_mlp = aux_ref[rank + 1:rank + 2, rank:rank + hidden]              # (1,H) f32

    ids = ids_ref[...]                                                  # (n,1) i32

    # ---- 1) vision: unfold + patch-embed + mean-pool as ONE matmul --------
    pooled = (
        jnp.dot(pix_ref[...], wfold_ref[...], preferred_element_type=f32) + b_v
    )                                                                   # (B,H) f32

    # ---- 2) token-embedding gather via exact one-hot matmul (in-kernel) ---
    vlane = jax.lax.broadcasted_iota(jnp.int32, (n, vocab), 1)
    onehot = (vlane == ids).astype(bf16)                                # (n,V) exact 0/1
    tok = jnp.dot(onehot, tok_emb, preferred_element_type=f32)          # (n,H) f32

    # ---- 3) broadcast pooled image features over each image's sequence ----
    pos = jax.lax.broadcasted_iota(jnp.int32, (n, batch), 0)
    bidx = jax.lax.broadcasted_iota(jnp.int32, (n, batch), 1)
    in_batch = jnp.logical_and(pos >= bidx * seq, pos < (bidx + 1) * seq)
    bcast = in_batch.astype(bf16)                                       # (n,B) exact 0/1
    img = jnp.dot(bcast, pooled.astype(bf16), preferred_element_type=f32)  # (n,H)
    x = tok + img                                                       # (n,H) f32

    # ---- 4) LoRA linear: base matmul + separate rank-r branch -------------
    # (no materialized (H,H) delta; matches the PEFT structure and keeps VMEM
    #  / FLOPs tiny at real hidden sizes.)
    x_bf = x.astype(bf16)
    base = jnp.dot(x_bf, w_mlp, preferred_element_type=f32)             # (n,H)
    xa = jnp.dot(x_bf, la.astype(bf16), preferred_element_type=f32)     # (n,r)
    lora_out = jnp.dot(xa.astype(bf16), lb.astype(bf16),
                       preferred_element_type=f32)                      # (n,H)
    # TODO(synk): PyTorch nn.GELU defaults to exact erf; jax.nn.gelu's tanh
    # approximation is used here (acceptable for this synthetic stand-in).
    h = jax.nn.gelu(base + lora_scale * lora_out + b_mlp)               # f32

    # ---- 5) LM head + causal cross-entropy (labels built in-kernel) -------
    logits = jnp.dot(h.astype(bf16), w_lm, preferred_element_type=f32)  # (n,V)
    m = jnp.max(logits, axis=-1, keepdims=True)
    lse = m + jnp.log(jnp.sum(jnp.exp(logits - m), axis=-1, keepdims=True))

    # valid[i] = position i is not the last token of its sequence.
    is_last = jnp.sum(
        jnp.where(pos == (bidx + 1) * seq - 1, 1, 0), axis=1, keepdims=True
    )                                                                   # (n,1) i32
    valid_col = (1 - is_last).astype(f32)                               # (n,1)
    # Shift matrix Sh[i,j] = 1 iff j == i+1 and i is valid  (label = ids[i+1]).
    ri = jax.lax.broadcasted_iota(jnp.int32, (n, n), 0)
    ci = jax.lax.broadcasted_iota(jnp.int32, (n, n), 1)
    sh = jnp.where(ci == ri + 1, valid_col, 0.0).astype(bf16)           # (n,n) exact 0/1
    onehot_lab = jnp.dot(sh, onehot, preferred_element_type=f32)        # (n,V) exact 0/1
    label_logit = jnp.sum(onehot_lab * logits, axis=-1, keepdims=True)  # (n,1)
    valid = jnp.sum(onehot_lab, axis=-1, keepdims=True)                 # (n,1) in {0,1}
    denom = jnp.maximum(jnp.sum(valid), 1.0)
    lm_loss = jnp.sum((lse - label_logit) * valid) / denom

    # ---- 6) L1 over LoRA parameters (exact f32 values, resident in VMEM) --
    num_lora = hidden * rank + rank * hidden
    l1_reg = (jnp.sum(jnp.abs(la)) + jnp.sum(jnp.abs(lb))) / float(num_lora)

    total = lm_loss + lambda_l1 * l1_reg

    # ---- 7) single unmasked lane-dense (1,128) store of the three scalars -
    lane_o = jax.lax.broadcasted_iota(jnp.int32, (1, 128), 1)
    out_ref[...] = (
        jnp.where(lane_o == 0, total, 0.0)
        + jnp.where(lane_o == 1, lm_loss, 0.0)
        + jnp.where(lane_o == 2, l1_reg, 0.0)
    ).astype(f32)


# ------------------------------ params ------------------------------------- #
def init_params(key, *, vocab=VOCAB, hidden=HIDDEN, rank=RANK,
                channels=CHANNELS, patch=PATCH):
    patch_dim = channels * patch * patch
    ks = jax.random.split(key, 5)
    scale = 0.02
    return {
        "w_vision": scale * jax.random.normal(ks[0], (patch_dim, hidden), jnp.float32),
        "b_vision": jnp.zeros((1, hidden), jnp.float32),
        "tok_emb": scale * jax.random.normal(ks[1], (vocab, hidden), jnp.float32),
        "w_mlp": scale * jax.random.normal(ks[2], (hidden, hidden), jnp.float32),
        "b_mlp": jnp.zeros((1, hidden), jnp.float32),
        # LoRA factors stored transposed vs. the PEFT convention (A_t:(H,r),
        # B_t:(r,H)); identical values / numel / L1, no transposes anywhere.
        "lora_A": scale * jax.random.normal(ks[3], (hidden, rank), jnp.float32),
        "lora_B": jnp.zeros((rank, hidden), jnp.float32) + 0.01,
        "w_lm": scale * jax.random.normal(ks[4], (hidden, vocab), jnp.float32),
    }


def pack_params(params, *, img=IMG, patch=PATCH, channels=CHANNELS):
    """One-time packing of parameters into the kernel's lane-dense operand slabs.

    Done once, outside the per-step jit, so the pallas_call sees 5 operands /
    5 DMAs (bf16 weights in HBM) instead of 11 sub-tile arrays per step.
    """
    hidden = params["w_mlp"].shape[0]
    vocab = params["w_lm"].shape[1]
    rank = params["lora_A"].shape[1]
    f32, bf16 = jnp.float32, jnp.bfloat16

    # Fold (patch unfold -> patch embed -> mean-pool over patches) into a single
    # (C*IMG*IMG, H) weight acting on the *un-transposed* flattened image:
    #   pooled[b] = mean_p(patches[b,p] @ W_v) = pix_flat[b] @ W_fold
    gp = img // patch
    num_patches = gp * gp
    c = np.arange(channels)[:, None, None]
    y = np.arange(img)[None, :, None]
    x = np.arange(img)[None, None, :]
    rel = (c * patch * patch + (y % patch) * patch + (x % patch)).reshape(-1)
    w_fold = (params["w_vision"][rel, :] / float(num_patches)).astype(bf16)

    # bf16 weight slab: [w_mlp | w_lm | tok_emb], lane-dense (rows, 128).
    ncols = 2 * hidden + vocab
    assert ncols <= 128, "weight slab layout assumes 2*H + V <= 128"
    nrows = max(vocab, hidden)
    wslab = jnp.zeros((nrows, 128), bf16)
    wslab = wslab.at[0:hidden, 0:hidden].set(params["w_mlp"].astype(bf16))
    wslab = wslab.at[0:hidden, hidden:hidden + vocab].set(params["w_lm"].astype(bf16))
    wslab = wslab.at[0:vocab, hidden + vocab:ncols].set(params["tok_emb"].astype(bf16))

    # f32 aux slab: LoRA factors (kept f32 so the L1 penalty and the low-rank
    # branch stay exact) plus the two biases.
    assert rank + 2 <= hidden and rank + hidden <= 128
    aux = jnp.zeros((hidden, 128), f32)
    aux = aux.at[0:hidden, 0:rank].set(params["lora_A"])
    aux = aux.at[0:rank, rank:rank + hidden].set(params["lora_B"])
    aux = aux.at[rank:rank + 1, rank:rank + hidden].set(params["b_vision"])
    aux = aux.at[rank + 1:rank + 2, rank:rank + hidden].set(params["b_mlp"])

    return {"w_fold": w_fold, "wslab": wslab, "aux": aux}


# ------------------------------ forward ------------------------------------- #
def forward(packed, input_ids, pixel_values, *, hidden=HIDDEN, vocab=VOCAB,
            rank=RANK, lambda_l1=0.01, lora_scale=2.0):
    B, S = input_ids.shape

    # Per-step glue: two contiguous reshapes + one dtype cast. Patch unfold /
    # pooling are folded into w_fold at pack time; token gather and label
    # shift happen inside the kernel.
    pix_flat = pixel_values.reshape(B, -1).astype(jnp.bfloat16)   # (B, C*IMG*IMG)
    ids_col = input_ids.reshape(B * S, 1).astype(jnp.int32)       # (B*S, 1)

    kernel = functools.partial(
        fused_forward_kernel,
        batch=B, seq=S, hidden=hidden, vocab=vocab, rank=rank,
        lora_scale=lora_scale, lambda_l1=lambda_l1,
    )
    out = pl.pallas_call(
        kernel,
        out_shape=jax.ShapeDtypeStruct((1, 128), jnp.float32),
        in_specs=[_vmem_spec()] * 5,
        out_specs=_vmem_spec(),
    )(pix_flat, ids_col, packed["w_fold"], packed["wslab"], packed["aux"])

    return {"loss": out[0, 0], "lm_loss": out[0, 1], "l1_reg": out[0, 2]}


# ------------------------------ main ----------------------------------------- #
if __name__ == "__main__":
    key = jax.random.PRNGKey(0)
    k_param, k_ids, k_pix = jax.random.split(key, 3)

    B, S = 2, 8
    params = init_params(k_param)
    packed = pack_params(params)   # one-time packing (outside the step)

    input_ids = jax.random.randint(k_ids, (B, S), 0, VOCAB, dtype=jnp.int32)
    pixel_values = jax.random.normal(k_pix, (B, CHANNELS, IMG, IMG), jnp.float32)

    fwd = jax.jit(lambda pk, ids, pix: forward(pk, ids, pix, lambda_l1=0.01))
    out = fwd(packed, input_ids, pixel_values)
    out = jax.tree_util.tree_map(jax.block_until_ready, out)

    assert jnp.isfinite(out["loss"]), "loss is not finite"
    print("KERNEL_OK")
</pallas_src>

<mosaic_0001>
module attributes {stable_mosaic.version = 11 : i64} {
  func.func @fused_forward_kernel(%arg0: memref<2x768xbf16, #tpu.memory_space<vmem>>, %arg1: memref<16x1xi32, #tpu.memory_space<vmem>>, %arg2: memref<768x32xbf16, #tpu.memory_space<vmem>>, %arg3: memref<64x128xbf16, #tpu.memory_space<vmem>>, %arg4: memref<32x128xf32, #tpu.memory_space<vmem>>, %arg5: memref<1x128xf32, #tpu.memory_space<vmem>>) attributes {dimension_semantics = [], scalar_prefetch = 0 : i64, scratch_operands = 0 : i64, tpu.core_type = #tpu.core_type<tc>} {
    %c0 = arith.constant 0 : index
    %c0_0 = arith.constant 0 : index
    %0 = vector.load %arg3[%c0, %c0_0] : memref<64x128xbf16, #tpu.memory_space<vmem>>, vector<32x32xbf16>
    %c0_1 = arith.constant 0 : index
    %c32 = arith.constant 32 : index
    %1 = vector.load %arg3[%c0_1, %c32] : memref<64x128xbf16, #tpu.memory_space<vmem>>, vector<32x64xbf16>
    %c0_2 = arith.constant 0 : index
    %c96 = arith.constant 96 : index
    %2 = vector.load %arg3[%c0_2, %c96] : memref<64x128xbf16, #tpu.memory_space<vmem>>, vector<64x32xbf16>
    %c0_3 = arith.constant 0 : index
    %c0_4 = arith.constant 0 : index
    %3 = vector.load %arg4[%c0_3, %c0_4] : memref<32x128xf32, #tpu.memory_space<vmem>>, vector<32x4xf32>
    %c0_5 = arith.constant 0 : index
    %c4 = arith.constant 4 : index
    %4 = vector.load %arg4[%c0_5, %c4] : memref<32x128xf32, #tpu.memory_space<vmem>>, vector<4x32xf32>
    %c4_6 = arith.constant 4 : index
    %c4_7 = arith.constant 4 : index
    %5 = vector.load %arg4[%c4_6, %c4_7] : memref<32x128xf32, #tpu.memory_space<vmem>>, vector<1x32xf32>
    %c5 = arith.constant 5 : index
    %c4_8 = arith.constant 4 : index
    %6 = vector.load %arg4[%c5, %c4_8] : memref<32x128xf32, #tpu.memory_space<vmem>>, vector<1x32xf32>
    %c0_9 = arith.constant 0 : index
    %c0_10 = arith.constant 0 : index
    %7 = vector.load %arg1[%c0_9, %c0_10] : memref<16x1xi32, #tpu.memory_space<vmem>>, vector<16x1xi32>
    %c0_11 = arith.constant 0 : index
    %c0_12 = arith.constant 0 : index
    %8 = vector.load %arg0[%c0_11, %c0_12] : memref<2x768xbf16, #tpu.memory_space<vmem>>, vector<2x768xbf16>
    %c0_13 = arith.constant 0 : index
    %c0_14 = arith.constant 0 : index
    %9 = vector.load %arg2[%c0_13, %c0_14] : memref<768x32xbf16, #tpu.memory_space<vmem>>, vector<768x32xbf16>
    %cst = arith.constant dense<0.000000e+00> : vector<2x32xf32>
    %10 = tpu.matmul %8, %9, %cst {dimension_numbers = #tpu.dot_dimension_numbers<[1], [0], [0], [1], [0, 0, 1, 1], [], []>} : vector<2x768xbf16>, vector<768x32xbf16>, vector<2x32xf32> -> vector<2x32xf32>
    %11 = vector.broadcast %5 : vector<1x32xf32> to vector<2x32xf32>
    %12 = arith.addf %10, %11 : vector<2x32xf32>
    %13 = tpu.iota {dimensions = array<i32: 1>} : vector<16x64xi32>
    %14 = vector.broadcast %7 : vector<16x1xi32> to vector<16x64xi32>
    %15 = arith.cmpi eq, %13, %14 : vector<16x64xi32>
    %16 = arith.extui %15 : vector<16x64xi1> to vector<16x64xi32>
    %17 = arith.sitofp %16 : vector<16x64xi32> to vector<16x64xf32>
    %18 = arith.truncf %17 : vector<16x64xf32> to vector<16x64xbf16>
    %cst_15 = arith.constant dense<0.000000e+00> : vector<16x32xf32>
    %19 = tpu.matmul %18, %2, %cst_15 {dimension_numbers = #tpu.dot_dimension_numbers<[1], [0], [0], [1], [0, 0, 1, 1], [], []>} : vector<16x64xbf16>, vector<64x32xbf16>, vector<16x32xf32> -> vector<16x32xf32>
    %20 = tpu.iota {dimensions = array<i32: 0>} : vector<16x2xi32>
    %21 = tpu.iota {dimensions = array<i32: 1>} : vector<16x2xi32>
    %c8_i32 = arith.constant 8 : i32
    %22 = vector.broadcast %c8_i32 : i32 to vector<16x2xi32>
    %23 = arith.muli %21, %22 : vector<16x2xi32>
    %24 = arith.cmpi sge, %20, %23 : vector<16x2xi32>
    %c1_i32 = arith.constant 1 : i32
    %25 = vector.broadcast %c1_i32 : i32 to vector<16x2xi32>
    %26 = arith.addi %21, %25 : vector<16x2xi32>
    %c8_i32_16 = arith.constant 8 : i32
    %27 = vector.broadcast %c8_i32_16 : i32 to vector<16x2xi32>
    %28 = arith.muli %26, %27 : vector<16x2xi32>
    %29 = arith.cmpi slt, %20, %28 : vector<16x2xi32>
    %30 = arith.andi %24, %29 : vector<16x2xi1>
    %31 = arith.extui %30 : vector<16x2xi1> to vector<16x2xi32>
    %32 = arith.sitofp %31 : vector<16x2xi32> to vector<16x2xf32>
    %33 = arith.truncf %32 : vector<16x2xf32> to vector<16x2xbf16>
    %34 = arith.truncf %12 : vector<2x32xf32> to vector<2x32xbf16>
    %cst_17 = arith.constant dense<0.000000e+00> : vector<16x32xf32>
    %35 = tpu.matmul %33, %34, %cst_17 {dimension_numbers = #tpu.dot_dimension_numbers<[1], [0], [0], [1], [0, 0, 1, 1], [], []>} : vector<16x2xbf16>, vector<2x32xbf16>, vector<16x32xf32> -> vector<16x32xf32>
    %36 = arith.addf %19, %35 : vector<16x32xf32>
    %37 = arith.truncf %36 : vector<16x32xf32> to vector<16x32xbf16>
    %cst_18 = arith.constant dense<0.000000e+00> : vector<16x32xf32>
    %38 = tpu.matmul %37, %0, %cst_18 {dimension_numbers = #tpu.dot_dimension_numbers<[1], [0], [0], [1], [0, 0, 1, 1], [], []>} : vector<16x32xbf16>, vector<32x32xbf16>, vector<16x32xf32> -> vector<16x32xf32>
    %39 = arith.truncf %3 : vector<32x4xf32> to vector<32x4xbf16>
    %cst_19 = arith.constant dense<0.000000e+00> : vector<16x4xf32>
    %40 = tpu.matmul %37, %39, %cst_19 {dimension_numbers = #tpu.dot_dimension_numbers<[1], [0], [0], [1], [0, 0, 1, 1], [], []>} : vector<16x32xbf16>, vector<32x4xbf16>, vector<16x4xf32> -> vector<16x4xf32>
    %41 = arith.truncf %40 : vector<16x4xf32> to vector<16x4xbf16>
    %42 = arith.truncf %4 : vector<4x32xf32> to vector<4x32xbf16>
    %cst_20 = arith.constant dense<0.000000e+00> : vector<16x32xf32>
    %43 = tpu.matmul %41, %42, %cst_20 {dimension_numbers = #tpu.dot_dimension_numbers<[1], [0], [0], [1], [0, 0, 1, 1], [], []>} : vector<16x4xbf16>, vector<4x32xbf16>, vector<16x32xf32> -> vector<16x32xf32>
    %cst_21 = arith.constant 2.000000e+00 : f32
    %44 = vector.broadcast %cst_21 : f32 to vector<16x32xf32>
    %45 = arith.mulf %44, %43 : vector<16x32xf32>
    %46 = arith.addf %38, %45 : vector<16x32xf32>
    %47 = vector.broadcast %6 : vector<1x32xf32> to vector<16x32xf32>
    %48 = arith.addf %46, %47 : vector<16x32xf32>
    %49 = arith.mulf %48, %48 : vector<16x32xf32>
    %50 = arith.mulf %48, %49 : vector<16x32xf32>
    %cst_22 = arith.constant 4.471500e-02 : f32
    %51 = vector.broadcast %cst_22 : f32 to vector<16x32xf32>
    %52 = arith.mulf %51, %50 : vector<16x32xf32>
    %53 = arith.addf %48, %52 : vector<16x32xf32>
    %cst_23 = arith.constant 0.797884583 : f32
    %54 = vector.broadcast %cst_23 : f32 to vector<16x32xf32>
    %55 = arith.mulf %54, %53 : vector<16x32xf32>
    %56 = math.tanh %55 : vector<16x32xf32>
    %cst_24 = arith.constant 1.000000e+00 : f32
    %57 = vector.broadcast %cst_24 : f32 to vector<16x32xf32>
    %58 = arith.addf %57, %56 : vector<16x32xf32>
    %cst_25 = arith.constant 5.000000e-01 : f32
    %59 = vector.broadcast %cst_25 : f32 to vector<16x32xf32>
    %60 = arith.mulf %59, %58 : vector<16x32xf32>
    %61 = arith.mulf %48, %60 : vector<16x32xf32>
    %62 = arith.truncf %61 : vector<16x32xf32> to vector<16x32xbf16>
    %cst_26 = arith.constant dense<0.000000e+00> : vector<16x64xf32>
    %63 = tpu.matmul %62, %1, %cst_26 {dimension_numbers = #tpu.dot_dimension_numbers<[1], [0], [0], [1], [0, 0, 1, 1], [], []>} : vector<16x32xbf16>, vector<32x64xbf16>, vector<16x64xf32> -> vector<16x64xf32>
    %cst_27 = arith.constant dense<0xFF800000> : vector<16xf32>
    %64 = vector.multi_reduction <maximumf>, %63, %cst_27 [1] : vector<16x64xf32> to vector<16xf32>
    %65 = vector.shape_cast %64 : vector<16xf32> to vector<16x1xf32>
    %66 = vector.broadcast %65 : vector<16x1xf32> to vector<16x64xf32>
    %67 = arith.subf %63, %66 : vector<16x64xf32>
    %68 = math.exp %67 : vector<16x64xf32>
    %cst_28 = arith.constant dense<0.000000e+00> : vector<16xf32>
    %69 = vector.multi_reduction <add>, %68, %cst_28 [1] : vector<16x64xf32> to vector<16xf32>
    %70 = vector.shape_cast %69 : vector<16xf32> to vector<16x1xf32>
    %71 = math.log %70 : vector<16x1xf32>
    %72 = arith.addf %65, %71 : vector<16x1xf32>
    %c1_i32_29 = arith.constant 1 : i32
    %73 = vector.broadcast %c1_i32_29 : i32 to vector<16x2xi32>
    %74 = arith.addi %21, %73 : vector<16x2xi32>
    %c8_i32_30 = arith.constant 8 : i32
    %75 = vector.broadcast %c8_i32_30 : i32 to vector<16x2xi32>
    %76 = arith.muli %74, %75 : vector<16x2xi32>
    %c1_i32_31 = arith.constant 1 : i32
    %77 = vector.broadcast %c1_i32_31 : i32 to vector<16x2xi32>
    %78 = arith.subi %76, %77 : vector<16x2xi32>
    %79 = arith.cmpi eq, %20, %78 : vector<16x2xi32>
    %c1_i32_32 = arith.constant 1 : i32
    %c0_i32 = arith.constant 0 : i32
    %80 = vector.broadcast %c1_i32_32 : i32 to vector<16x2xi32>
    %81 = vector.broadcast %c0_i32 : i32 to vector<16x2xi32>
    %82 = arith.select %79, %80, %81 : vector<16x2xi1>, vector<16x2xi32>
    %cst_33 = arith.constant dense<0> : vector<16xi32>
    %83 = vector.multi_reduction <add>, %82, %cst_33 [1] : vector<16x2xi32> to vector<16xi32>
    %84 = vector.shape_cast %83 : vector<16xi32> to vector<16x1xi32>
    %c1_i32_34 = arith.constant 1 : i32
    %85 = vector.broadcast %c1_i32_34 : i32 to vector<16x1xi32>
    %86 = arith.subi %85, %84 : vector<16x1xi32>
    %87 = arith.sitofp %86 : vector<16x1xi32> to vector<16x1xf32>
    %88 = tpu.iota {dimensions = array<i32: 0>} : vector<16x16xi32>
    %89 = tpu.iota {dimensions = array<i32: 1>} : vector<16x16xi32>
    %c1_i32_35 = arith.constant 1 : i32
    %90 = vector.broadcast %c1_i32_35 : i32 to vector<16x16xi32>
    %91 = arith.addi %88, %90 : vector<16x16xi32>
    %92 = arith.cmpi eq, %89, %91 : vector<16x16xi32>
    %cst_36 = arith.constant 0.000000e+00 : f32
    %93 = vector.shape_cast %87 : vector<16x1xf32> to vector<16x1xf32>
    %94 = vector.broadcast %93 : vector<16x1xf32> to vector<16x16xf32>
    %95 = vector.broadcast %cst_36 : f32 to vector<16x16xf32>
    %96 = arith.select %92, %94, %95 : vector<16x16xi1>, vector<16x16xf32>
    %97 = arith.truncf %96 : vector<16x16xf32> to vector<16x16xbf16>
    %cst_37 = arith.constant dense<0.000000e+00> : vector<16x64xf32>
    %98 = tpu.matmul %97, %18, %cst_37 {dimension_numbers = #tpu.dot_dimension_numbers<[1], [0], [0], [1], [0, 0, 1, 1], [], []>} : vector<16x16xbf16>, vector<16x64xbf16>, vector<16x64xf32> -> vector<16x64xf32>
    %99 = arith.mulf %98, %63 : vector<16x64xf32>
    %cst_38 = arith.constant dense<0.000000e+00> : vector<16xf32>
    %100 = vector.multi_reduction <add>, %99, %cst_38 [1] : vector<16x64xf32> to vector<16xf32>
    %101 = vector.shape_cast %100 : vector<16xf32> to vector<16x1xf32>
    %cst_39 = arith.constant dense<0.000000e+00> : vector<16xf32>
    %102 = vector.multi_reduction <add>, %98, %cst_39 [1] : vector<16x64xf32> to vector<16xf32>
    %103 = vector.shape_cast %102 : vector<16xf32> to vector<16x1xf32>
    %104 = vector.shape_cast %103 : vector<16x1xf32> to vector<1x16x1xf32>
    %cst_40 = arith.constant dense<0.000000e+00> : vector<1xf32>
    %105 = vector.multi_reduction <add>, %104, %cst_40 [1, 2] : vector<1x16x1xf32> to vector<1xf32>
    %106 = vector.shape_cast %105 : vector<1xf32> to vector<1x1x1xf32>
    %107 = vector.extract %106[0, 0, 0] : f32 from vector<1x1x1xf32>
    %cst_41 = arith.constant 1.000000e+00 : f32
    %108 = arith.maximumf %107, %cst_41 : f32
    %109 = arith.subf %72, %101 : vector<16x1xf32>
    %110 = arith.mulf %109, %103 : vector<16x1xf32>
    %111 = vector.shape_cast %110 : vector<16x1xf32> to vector<1x16x1xf32>
    %cst_42 = arith.constant dense<0.000000e+00> : vector<1xf32>
    %112 = vector.multi_reduction <add>, %111, %cst_42 [1, 2] : vector<1x16x1xf32> to vector<1xf32>
    %113 = vector.shape_cast %112 : vector<1xf32> to vector<1x1x1xf32>
    %114 = vector.extract %113[0, 0, 0] : f32 from vector<1x1x1xf32>
    %115 = arith.divf %114, %108 : f32
    %116 = math.absf %3 : vector<32x4xf32>
    %117 = vector.shape_cast %116 : vector<32x4xf32> to vector<1x32x4xf32>
    %cst_43 = arith.constant dense<0.000000e+00> : vector<1xf32>
    %118 = vector.multi_reduction <add>, %117, %cst_43 [1, 2] : vector<1x32x4xf32> to vector<1xf32>
    %119 = vector.shape_cast %118 : vector<1xf32> to vector<1x1x1xf32>
    %120 = vector.extract %119[0, 0, 0] : f32 from vector<1x1x1xf32>
    %121 = math.absf %4 : vector<4x32xf32>
    %122 = vector.shape_cast %121 : vector<4x32xf32> to vector<1x4x32xf32>
    %cst_44 = arith.constant dense<0.000000e+00> : vector<1xf32>
    %123 = vector.multi_reduction <add>, %122, %cst_44 [1, 2] : vector<1x4x32xf32> to vector<1xf32>
    %124 = vector.shape_cast %123 : vector<1xf32> to vector<1x1x1xf32>
    %125 = vector.extract %124[0, 0, 0] : f32 from vector<1x1x1xf32>
    %126 = arith.addf %120, %125 : f32
    %cst_45 = arith.constant 2.560000e+02 : f32
    %127 = arith.divf %126, %cst_45 : f32
    %cst_46 = arith.constant 0.00999999977 : f32
    %128 = arith.mulf %cst_46, %127 : f32
    %129 = arith.addf %115, %128 : f32
    %130 = tpu.iota {dimensions = array<i32: 1>} : vector<1x128xi32>
    %c0_i32_47 = arith.constant 0 : i32
    %131 = vector.broadcast %c0_i32_47 : i32 to vector<1x128xi32>
    %132 = arith.cmpi eq, %130, %131 : vector<1x128xi32>
    %cst_48 = arith.constant 0.000000e+00 : f32
    %133 = vector.broadcast %129 : f32 to vector<1x128xf32>
    %134 = vector.broadcast %cst_48 : f32 to vector<1x128xf32>
    %135 = arith.select %132, %133, %134 : vector<1x128xi1>, vector<1x128xf32>
    %c1_i32_49 = arith.constant 1 : i32
    %136 = vector.broadcast %c1_i32_49 : i32 to vector<1x128xi32>
    %137 = arith.cmpi eq, %130, %136 : vector<1x128xi32>
    %cst_50 = arith.constant 0.000000e+00 : f32
    %138 = vector.broadcast %115 : f32 to vector<1x128xf32>
    %139 = vector.broadcast %cst_50 : f32 to vector<1x128xf32>
    %140 = arith.select %137, %138, %139 : vector<1x128xi1>, vector<1x128xf32>
    %141 = arith.addf %135, %140 : vector<1x128xf32>
    %c2_i32 = arith.constant 2 : i32
    %142 = vector.broadcast %c2_i32 : i32 to vector<1x128xi32>
    %143 = arith.cmpi eq, %130, %142 : vector<1x128xi32>
    %cst_51 = arith.constant 0.000000e+00 : f32
    %144 = vector.broadcast %127 : f32 to vector<1x128xf32>
    %145 = vector.broadcast %cst_51 : f32 to vector<1x128xf32>
    %146 = arith.select %143, %144, %145 : vector<1x128xi1>, vector<1x128xf32>
    %147 = arith.addf %141, %146 : vector<1x128xf32>
    %c0_52 = arith.constant 0 : index
    %c0_53 = arith.constant 0 : index
    %148 = vector.load %arg5[%c0_52, %c0_53] : memref<1x128xf32, #tpu.memory_space<vmem>>, vector<1x128xf32>
    tpu.vector_store %arg5[%c0_52, %c0_53], %147 {strides = array<i32>} : memref<1x128xf32, #tpu.memory_space<vmem>>, vector<1x128xf32>,
    return
  }
}

</mosaic_0001>

<llo_original>
// kernel: _lambda_.1
$region0: #{_lambda_.1}
  #allocation0 [shape = 'u32[]', space=smem, size = 0x4, offset = 0x4, fixed_abs, tag = 'smem constant byte address 0x4 - core index']
  #allocation1 [shape = 'u32[144,128]{1,0:T(1,128)}', space=vmem, size = 0x12000, scoped, tag = 'internal scratch']
  %s0 = inlined_call_operand.vmem [shape: bf16[2,768], index: 0, kind: input, shape index: {}]
  %s1 = inlined_call_operand.vmem [shape: s32[16,1], index: 1, kind: input, shape index: {}]
  %s2 = inlined_call_operand.vmem [shape: bf16[768,32], index: 2, kind: input, shape index: {}]
  %s3 = inlined_call_operand.vmem [shape: bf16[64,128], index: 3, kind: input, shape index: {}]
  %s4 = inlined_call_operand.vmem [shape: f32[32,128], index: 4, kind: input, shape index: {}]
  %s5 = inlined_call_operand.vmem [shape: f32[1,128], index: 5, kind: output, shape index: {}]
  %s6 = sld [smem:[#allocation0]]
  $region30: #{_lambda_.1} parent=0
    _
  %s8 = ssub.s32 1, %s6
  %s9 = scalar_select 0, %s8, %s6
  // Predicated region
  $region2: #{_lambda_.1} parent=0 // pred_check
    _
  $region3: #{_lambda_.1} parent=0 // pred_check_branch
    %11 = sbr.rel (0) target = $region5
  $region4: #{_lambda_.1} parent=0 // pred_region
    _
  $region5: #{_lambda_.1} parent=0 // pred_fallthru
    _
  // Predicated region
  $region6: #{_lambda_.1} parent=0 // pred_check
    _
  $region7: #{_lambda_.1} parent=0 // pred_check_branch
    %13 = sbr.rel (0) target = $region9
  $region8: #{_lambda_.1} parent=0 // pred_region
    _
  $region9: #{_lambda_.1} parent=0 // pred_fallthru
    _
  // Predicated region
  $region10: #{_lambda_.1} parent=0 // pred_check
    _
  $region11: #{_lambda_.1} parent=0 // pred_check_branch
    %15 = sbr.rel (0) target = $region13
  $region12: #{_lambda_.1} parent=0 // pred_region
    _
  $region13: #{_lambda_.1} parent=0 // pred_fallthru
    _
  // Predicated region
  $region14: #{_lambda_.1} parent=0 // pred_check
    _
  $region15: #{_lambda_.1} parent=0 // pred_check_branch
    %17 = sbr.rel (0) target = $region17
  $region16: #{_lambda_.1} parent=0 // pred_region
    _
  $region17: #{_lambda_.1} parent=0 // pred_fallthru
    _
  // Predicated region
  $region18: #{_lambda_.1} parent=0 // pred_check
    _
  $region19: #{_lambda_.1} parent=0 // pred_check_branch
    %19 = sbr.rel (0) target = $region21
  $region20: #{_lambda_.1} parent=0 // pred_region
    _
  $region21: #{_lambda_.1} parent=0 // pred_fallthru
    _
  %v21 = vld [vmem:[%s3] sm:$0xf]
  %v22 = vld [vmem:[%s3 + $0x4] sm:$0xf]
  %v23 = vld [vmem:[%s3 + $0x8] sm:$0xf]
  %v24 = vld [vmem:[%s3 + $0xc] sm:$0xf]
  %v25 = vld [vmem:[%s3] sm:$0xf]
  %v26 = vld [vmem:[%s3 + $0x4] sm:$0xf]
  %v27 = vld [vmem:[%s3 + $0x8] sm:$0xf]
  %v28 = vld [vmem:[%s3 + $0xc] sm:$0xf]
  %v29 = vld [vmem:[%s3 + $0x10] sm:$0xf]
  %v30 = vld [vmem:[%s3 + $0x14] sm:$0xf]
  %v31 = vld [vmem:[%s3 + $0x18] sm:$0xf]
  %v32 = vld [vmem:[%s3 + $0x1c] sm:$0xf]
  %v33 = vld [vmem:[%s4] sm:$0xff]
  %v34 = vld [vmem:[%s4 + $0x8] sm:$0xff]
  %v35 = vld [vmem:[%s4 + $0x10] sm:$0xff]
  %v36 = vld [vmem:[%s4 + $0x18] sm:$0xff]
  %v37 = vld [vmem:[%s4] sm:$0xf]
  %v38 = vld [vmem:[%s4 + $0x4] sm:$0x1]
  %v39 = vld [vmem:[%s4 + $0x5] sm:$0x1]
  %v40 = vld [vmem:[%s1] sm:$0xff]
  %v41 = vld [vmem:[%s1 + $0x8] sm:$0xff]
  %v42 = vld [vmem:[%s0] sm:$0x3f]
  %v43 = vld [vmem:[%s2] sm:$0xf]
  %v44 = vld [vmem:[%s2 + $0x4] sm:$0xf]
  %v45 = vld [vmem:[%s2 + $0x8] sm:$0xf]
  %v46 = vld [vmem:[%s2 + $0xc] sm:$0xf]
  %v47 = vld [vmem:[%s2 + $0x10] sm:$0xf]
  %v48 = vld [vmem:[%s2 + $0x14] sm:$0xf]
  %v49 = vld [vmem:[%s2 + $0x18] sm:$0xf]
  %v50 = vld [vmem:[%s2 + $0x1c] sm:$0xf]
  %v51 = vld [vmem:[%s2 + $0x20] sm:$0xf]
  %v52 = vld [vmem:[%s2 + $0x24] sm:$0xf]
  %v53 = vld [vmem:[%s2 + $0x28] sm:$0xf]
  %v54 = vld [vmem:[%s2 + $0x2c] sm:$0xf]
  %v55 = vld [vmem:[%s2 + $0x30] sm:$0xf]
  %v56 = vld [vmem:[%s2 + $0x34] sm:$0xf]
  %v57 = vld [vmem:[%s2 + $0x38] sm:$0xf]
  %v58 = vld [vmem:[%s2 + $0x3c] sm:$0xf]
  %v59 = vld [vmem:[%s2 + $0x40] sm:$0xf]
  %v60 = vld [vmem:[%s2 + $0x44] sm:$0xf]
  %v61 = vld [vmem:[%s2 + $0x48] sm:$0xf]
  %v62 = vld [vmem:[%s2 + $0x4c] sm:$0xf]
  %v63 = vld [vmem:[%s2 + $0x50] sm:$0xf]
  %v64 = vld [vmem:[%s2 + $0x54] sm:$0xf]
  %v65 = vld [vmem:[%s2 + $0x58] sm:$0xf]
  %v66 = vld [vmem:[%s2 + $0x5c] sm:$0xf]
  %v67 = vld [vmem:[%s2 + $0x60] sm:$0xf]
  %v68 = vld [vmem:[%s2 + $0x64] sm:$0xf]
  %v69 = vld [vmem:[%s2 + $0x68] sm:$0xf]
  %v70 = vld [vmem:[%s2 + $0x6c] sm:$0xf]
  %v71 = vld [vmem:[%s2 + $0x70] sm:$0xf]
  %v72 = vld [vmem:[%s2 + $0x74] sm:$0xf]
  %v73 = vld [vmem:[%s2 + $0x78] sm:$0xf]
  %v74 = vld [vmem:[%s2 + $0x7c] sm:$0xf]
  %v75 = vld [vmem:[%s2 + $0x80] sm:$0xf]
  %v76 = vld [vmem:[%s2 + $0x84] sm:$0xf]
  %v77 = vld [vmem:[%s2 + $0x88] sm:$0xf]
  %v78 = vld [vmem:[%s2 + $0x8c] sm:$0xf]
  %v79 = vld [vmem:[%s2 + $0x90] sm:$0xf]
  %v80 = vld [vmem:[%s2 + $0x94] sm:$0xf]
  %v81 = vld [vmem:[%s2 + $0x98] sm:$0xf]
  %v82 = vld [vmem:[%s2 + $0x9c] sm:$0xf]
  %v83 = vld [vmem:[%s2 + $0xa0] sm:$0xf]
  %v84 = vld [vmem:[%s2 + $0xa4] sm:$0xf]
  %v85 = vld [vmem:[%s2 + $0xa8] sm:$0xf]
  %v86 = vld [vmem:[%s2 + $0xac] sm:$0xf]
  %v87 = vld [vmem:[%s2 + $0xb0] sm:$0xf]
  %v88 = vld [vmem:[%s2 + $0xb4] sm:$0xf]
  %v89 = vld [vmem:[%s2 + $0xb8] sm:$0xf]
  %v90 = vld [vmem:[%s2 + $0xbc] sm:$0xf]
  %v91 = vld [vmem:[%s2 + $0xc0] sm:$0xf]
  %v92 = vld [vmem:[%s2 + $0xc4] sm:$0xf]
  %v93 = vld [vmem:[%s2 + $0xc8] sm:$0xf]
  %v94 = vld [vmem:[%s2 + $0xcc] sm:$0xf]
  %v95 = vld [vmem:[%s2 + $0xd0] sm:$0xf]
  %v96 = vld [vmem:[%s2 + $0xd4] sm:$0xf]
  %v97 = vld [vmem:[%s2 + $0xd8] sm:$0xf]
  %v98 = vld [vmem:[%s2 + $0xdc] sm:$0xf]
  %v99 = vld [vmem:[%s2 + $0xe0] sm:$0xf]
  %v100 = vld [vmem:[%s2 + $0xe4] sm:$0xf]
  %v101 = vld [vmem:[%s2 + $0xe8] sm:$0xf]
  %v102 = vld [vmem:[%s2 + $0xec] sm:$0xf]
  %v103 = vld [vmem:[%s2 + $0xf0] sm:$0xf]
  %v104 = vld [vmem:[%s2 + $0xf4] sm:$0xf]
  %v105 = vld [vmem:[%s2 + $0xf8] sm:$0xf]
  %v106 = vld [vmem:[%s2 + $0xfc] sm:$0xf]
  %v107 = vld [vmem:[%s2 + $0x100] sm:$0xf]
  %v108 = vld [vmem:[%s2 + $0x104] sm:$0xf]
  %v109 = vld [vmem:[%s2 + $0x108] sm:$0xf]
  %v110 = vld [vmem:[%s2 + $0x10c] sm:$0xf]
  %v111 = vld [vmem:[%s2 + $0x110] sm:$0xf]
  %v112 = vld [vmem:[%s2 + $0x114] sm:$0xf]
  %v113 = vld [vmem:[%s2 + $0x118] sm:$0xf]
  %v114 = vld [vmem:[%s2 + $0x11c] sm:$0xf]
  %v115 = vld [vmem:[%s2 + $0x120] sm:$0xf]
  %v116 = vld [vmem:[%s2 + $0x124] sm:$0xf]
  %v117 = vld [vmem:[%s2 + $0x128] sm:$0xf]
  %v118 = vld [vmem:[%s2 + $0x12c] sm:$0xf]
  %v119 = vld [vmem:[%s2 + $0x130] sm:$0xf]
  %v120 = vld [vmem:[%s2 + $0x134] sm:$0xf]
  %v121 = vld [vmem:[%s2 + $0x138] sm:$0xf]
  %v122 = vld [vmem:[%s2 + $0x13c] sm:$0xf]
  %v123 = vld [vmem:[%s2 + $0x140] sm:$0xf]
  %v124 = vld [vmem:[%s2 + $0x144] sm:$0xf]
  %v125 = vld [vmem:[%s2 + $0x148] sm:$0xf]
  %v126 = vld [vmem:[%s2 + $0x14c] sm:$0xf]
  %v127 = vld [vmem:[%s2 + $0x150] sm:$0xf]
  %v128 = vld [vmem:[%s2 + $0x154] sm:$0xf]
  %v129 = vld [vmem:[%s2 + $0x158] sm:$0xf]
  %v130 = vld [vmem:[%s2 + $0x15c] sm:$0xf]
  %v131 = vld [vmem:[%s2 + $0x160] sm:$0xf]
  %v132 = vld [vmem:[%s2 + $0x164] sm:$0xf]
  %v133 = vld [vmem:[%s2 + $0x168] sm:$0xf]
  %v134 = vld [vmem:[%s2 + $0x16c] sm:$0xf]
  %v135 = vld [vmem:[%s2 + $0x170] sm:$0xf]
  %v136 = vld [vmem:[%s2 + $0x174] sm:$0xf]
  %v137 = vld [vmem:[%s2 + $0x178] sm:$0xf]
  %v138 = vld [vmem:[%s2 + $0x17c] sm:$0xf]
  %v139 = vlaneseq
  %v140 = vshrl.u32 %v139, 7
  %v141 = vsub.s32 0, %v140
  %v142 = vrot.slane %v38, %v141
  %v144 = vcombine.high %v42, %v42
  %v146 = vunpack.c.l.s4 1966171168
  %v147 = vunpack.c.0.s8 %v146
  %v148 = vlaneseq
  %v149 = vshrl.u32 %v148, 7
  %v150 = vsub.s32 %v147, %v149
  %v151 = vrot.slane %v42, %v150
  %v153 = vunpack.c.l.s4 1966171168
  %v154 = vunpack.c.0.s8 %v153
  %v155 = vlaneseq
  %v156 = vshrl.u32 %v155, 7
  %v157 = vsub.s32 %v154, %v156
  %v158 = vrot.slane %v144, %v157
  %v159 = vcombine.high %v151, %v151
  %v160 = vcombine.high %v158, %v158
  %v162 = vunpack.c.l.s4 1966171168
  %v163 = vunpack.c.0.s8 %v162
  %v164 = vlaneseq
  %v165 = vshrl.u32 %v164, 7
  %v166 = vsub.s32 %v163, %v165
  %v167 = vrot.slane %v151, %v166
  %v169 = vunpack.c.l.s4 1966171168
  %v170 = vunpack.c.0.s8 %v169
  %v171 = vlaneseq
  %v172 = vshrl.u32 %v171, 7
  %v173 = vsub.s32 %v170, %v172
  %v174 = vrot.slane %v158, %v173
  %v176 = vunpack.c.l.s4 1966171168
  %v177 = vunpack.c.0.s8 %v176
  %v178 = vlaneseq
  %v179 = vshrl.u32 %v178, 7
  %v180 = vsub.s32 %v177, %v179
  %v181 = vrot.slane %v159, %v180
  %v183 = vunpack.c.l.s4 1966171168
  %v184 = vunpack.c.0.s8 %v183
  %v185 = vlaneseq
  %v186 = vshrl.u32 %v185, 7
  %v187 = vsub.s32 %v184, %v186
  %v188 = vrot.slane %v160, %v187
  %v189 = vcombine.high %v167, %v167
  %v190 = vcombine.high %v181, %v181
  %v293 = vunpack.c.l.b16 %v43
  %v294 = vunpack.c.l.b16 %v44
  %v295 = vunpack.c.l.b16 %v45
  %v296 = vunpack.c.l.b16 %v46
  %v297 = vunpack.c.l.b16 %v47
  %v298 = vunpack.c.l.b16 %v48
  %v299 = vunpack.c.l.b16 %v49
  %v300 = vunpack.c.l.b16 %v50
  %v301 = vunpack.c.l.b16 %v51
  %v302 = vunpack.c.l.b16 %v52
  %v303 = vunpack.c.l.b16 %v53
  %v304 = vunpack.c.l.b16 %v54
  %v305 = vunpack.c.l.b16 %v55
  %v306 = vunpack.c.l.b16 %v56
  %v307 = vunpack.c.l.b16 %v57
  %v308 = vunpack.c.l.b16 %v58
  %v309 = vunpack.c.l.b16 %v59
  %v310 = vunpack.c.l.b16 %v60
  %v311 = vunpack.c.l.b16 %v61
  %v312 = vunpack.c.l.b16 %v62
  %v313 = vunpack.c.l.b16 %v63
  %v314 = vunpack.c.l.b16 %v64
  %v315 = vunpack.c.l.b16 %v65
  %v316 = vunpack.c.l.b16 %v66
  %v317 = vunpack.c.l.b16 %v67
  %v318 = vunpack.c.l.b16 %v68
  %v319 = vunpack.c.l.b16 %v69
  %v320 = vunpack.c.l.b16 %v70
  %v321 = vunpack.c.l.b16 %v71
  %v322 = vunpack.c.l.b16 %v72
  %v323 = vunpack.c.l.b16 %v73
  %v324 = vunpack.c.l.b16 %v74
  %v325 = vunpack.c.l.b16 %v75
  %v326 = vunpack.c.l.b16 %v76
  %v327 = vunpack.c.l.b16 %v77
  %v328 = vunpack.c.l.b16 %v78
  %v329 = vunpack.c.l.b16 %v79
  %v330 = vunpack.c.l.b16 %v80
  %v331 = vunpack.c.l.b16 %v81
  %v332 = vunpack.c.l.b16 %v82
  %v333 = vunpack.c.l.b16 %v83
  %v334 = vunpack.c.l.b16 %v84
  %v335 = vunpack.c.l.b16 %v85
  %v336 = vunpack.c.l.b16 %v86
  %v337 = vunpack.c.l.b16 %v87
  %v338 = vunpack.c.l.b16 %v88
  %v339 = vunpack.c.l.b16 %v89
  %v340 = vunpack.c.l.b16 %v90
  %v341 = vunpack.c.l.b16 %v91
  %v342 = vunpack.c.l.b16 %v92
  %v343 = vunpack.c.l.b16 %v93
  %v344 = vunpack.c.l.b16 %v94
  %v345 = vunpack.c.l.b16 %v95
  %v346 = vunpack.c.l.b16 %v96
  %v347 = vunpack.c.l.b16 %v97
  %v348 = vunpack.c.l.b16 %v98
  %v349 = vunpack.c.l.b16 %v99
  %v350 = vunpack.c.l.b16 %v100
  %v351 = vunpack.c.l.b16 %v101
  %v352 = vunpack.c.l.b16 %v102
  %v353 = vunpack.c.l.b16 %v103
  %v354 = vunpack.c.l.b16 %v104
  %v355 = vunpack.c.l.b16 %v105
  %v356 = vunpack.c.l.b16 %v106
  %v357 = vunpack.c.l.b16 %v107
  %v358 = vunpack.c.l.b16 %v108
  %v359 = vunpack.c.l.b16 %v109
  %v360 = vunpack.c.l.b16 %v110
  %v361 = vunpack.c.l.b16 %v111
  %v362 = vunpack.c.l.b16 %v112
  %v363 = vunpack.c.l.b16 %v113
  %v364 = vunpack.c.l.b16 %v114
  %v365 = vunpack.c.l.b16 %v115
  %v366 = vunpack.c.l.b16 %v116
  %v367 = vunpack.c.l.b16 %v117
  %v368 = vunpack.c.l.b16 %v118
  %v369 = vunpack.c.l.b16 %v119
  %v370 = vunpack.c.l.b16 %v120
  %v371 = vunpack.c.l.b16 %v121
  %v372 = vunpack.c.l.b16 %v122
  %v373 = vunpack.c.l.b16 %v123
  %v374 = vunpack.c.l.b16 %v124
  %v375 = vunpack.c.l.b16 %v125
  %v376 = vunpack.c.l.b16 %v126
  %v377 = vunpack.c.l.b16 %v127
  %v378 = vunpack.c.l.b16 %v128
  %v379 = vunpack.c.l.b16 %v129
  %v380 = vunpack.c.l.b16 %v130
  %v381 = vunpack.c.l.b16 %v131
  %v382 = vunpack.c.l.b16 %v132
  %v383 = vunpack.c.l.b16 %v133
  %v384 = vunpack.c.l.b16 %v134
  %v385 = vunpack.c.l.b16 %v135
  %v386 = vunpack.c.l.b16 %v136
  %v387 = vunpack.c.l.b16 %v137
  %v388 = vunpack.c.l.b16 %v138
  %v389 = vpack.c.b16 %v294, %v293
  %v390 = vpack.c.b16 %v296, %v295
  %v391 = vpack.c.b16 %v298, %v297
  %v392 = vpack.c.b16 %v300, %v299
  %v393 = vpack.c.b16 %v302, %v301
  %v394 = vpack.c.b16 %v304, %v303
  %v395 = vpack.c.b16 %v306, %v305
  %v396 = vpack.c.b16 %v308, %v307
  %v397 = vpack.c.b16 %v310, %v309
  %v398 = vpack.c.b16 %v312, %v311
  %v399 = vpack.c.b16 %v314, %v313
  %v400 = vpack.c.b16 %v316, %v315
  %v401 = vpack.c.b16 %v318, %v317
  %v402 = vpack.c.b16 %v320, %v319
  %v403 = vpack.c.b16 %v322, %v321
  %v404 = vpack.c.b16 %v324, %v323
  %v405 = vpack.c.b16 %v326, %v325
  %v406 = vpack.c.b16 %v328, %v327
  %v407 = vpack.c.b16 %v330, %v329
  %v408 = vpack.c.b16 %v332, %v331
  %v409 = vpack.c.b16 %v334, %v333
  %v410 = vpack.c.b16 %v336, %v335
  %v411 = vpack.c.b16 %v338, %v337
  %v412 = vpack.c.b16 %v340, %v339
  %v413 = vpack.c.b16 %v342, %v341
  %v414 = vpack.c.b16 %v344, %v343
  %v415 = vpack.c.b16 %v346, %v345
  %v416 = vpack.c.b16 %v348, %v347
  %v417 = vpack.c.b16 %v350, %v349
  %v418 = vpack.c.b16 %v352, %v351
  %v419 = vpack.c.b16 %v354, %v353
  %v420 = vpack.c.b16 %v356, %v355
  %v421 = vpack.c.b16 %v358, %v357
  %v422 = vpack.c.b16 %v360, %v359
  %v423 = vpack.c.b16 %v362, %v361
  %v424 = vpack.c.b16 %v364, %v363
  %v425 = vpack.c.b16 %v366, %v365
  %v426 = vpack.c.b16 %v368, %v367
  %v427 = vpack.c.b16 %v370, %v369
  %v428 = vpack.c.b16 %v372, %v371
  %v429 = vpack.c.b16 %v374, %v373
  %v430 = vpack.c.b16 %v376, %v375
  %v431 = vpack.c.b16 %v378, %v377
  %v432 = vpack.c.b16 %v380, %v379
  %v433 = vpack.c.b16 %v382, %v381
  %v434 = vpack.c.b16 %v384, %v383
  %v435 = vpack.c.b16 %v386, %v385
  %v436 = vpack.c.b16 %v388, %v387
  %486 = vrot.lane.b32.xlu0 %v142, 124
  %v487 = vpop.permute.xlu0 %486
  %489 = vmatprep.subr.bf16.mxu0 0
  %490 = vmatpush1.bf16.msra.mxu0 %v389
  %491 = vmatprep.subr.bf16.mxu0 0
  %492 = vmatpush1.bf16.msra.mxu0 %v390
  %493 = vmatprep.subr.bf16.mxu0 0
  %494 = vmatpush1.bf16.msra.mxu0 %v391
  %495 = vmatprep.subr.bf16.mxu0 0
  %496 = vmatpush1.bf16.msra.mxu0 %v392
  %497 = vmatprep.subr.bf16.mxu0 0
  %498 = vmatpush1.bf16.msra.mxu0 %v393
  %499 = vmatprep.subr.bf16.mxu0 0
  %500 = vmatpush1.bf16.msra.mxu0 %v394
  %501 = vmatprep.subr.bf16.mxu0 0
  %502 = vmatpush1.bf16.msra.mxu0 %v395
  %503 = vmatprep.subr.bf16.mxu0 0
  %504 = vmatpush1.bf16.msra.mxu0 %v396
  %505 = vmatprep.subr.bf16.mxu0 0
  %506 = vmatpush1.bf16.msra.mxu0 %v397
  %507 = vmatprep.subr.bf16.mxu0 0
  %508 = vmatpush1.bf16.msra.mxu0 %v398
  %509 = vmatprep.subr.bf16.mxu0 0
  %510 = vmatpush1.bf16.msra.mxu0 %v399
  %511 = vmatprep.subr.bf16.mxu0 0
  %512 = vmatpush1.bf16.msra.mxu0 %v400
  %513 = vmatprep.subr.bf16.mxu0 0
  %514 = vmatpush1.bf16.msra.mxu0 %v401
  %515 = vmatprep.subr.bf16.mxu0 0
  %516 = vmatpush1.bf16.msra.mxu0 %v402
  %517 = vmatprep.subr.bf16.mxu0 0
  %518 = vmatpush1.bf16.msra.mxu0 %v403
  %519 = vmatprep.subr.bf16.mxu0 0
  %520 = vmatpush1.bf16.msra.mxu0 %v404
  %521 = vmatprep.mubr.bf16.mxu0 %v181
  %522 = vmatmul.mubr.bf16.gmra.mrb[0].mxu0 %v167
  %v523 = vpop.f32.mrb[0].mxu0
  %v524 = vadd.f32 %v487, %v523
  %v525 = vpop.f32.mrb[0].mxu0
  %v526 = vpop.f32.mrb[0].mxu0
  %v527 = vpop.f32.mrb[0].mxu0
  %528 = vdwg.mxu0
  %529 = vmatprep.subr.bf16.mxu0 0
  %530 = vmatpush1.bf16.msra.mxu0 %v405
  %531 = vmatprep.subr.bf16.mxu0 0
  %532 = vmatpush1.bf16.msra.mxu0 %v406
  %533 = vmatprep.subr.bf16.mxu0 0
  %534 = vmatpush1.bf16.msra.mxu0 %v407
  %535 = vmatprep.subr.bf16.mxu0 0
  %536 = vmatpush1.bf16.msra.mxu0 %v408
  %537 = vmatprep.subr.bf16.mxu0 0
  %538 = vmatpush1.bf16.msra.mxu0 %v409
  %539 = vmatprep.subr.bf16.mxu0 0
  %540 = vmatpush1.bf16.msra.mxu0 %v410
  %541 = vmatprep.subr.bf16.mxu0 0
  %542 = vmatpush1.bf16.msra.mxu0 %v411
  %543 = vmatprep.subr.bf16.mxu0 0
  %544 = vmatpush1.bf16.msra.mxu0 %v412
  %545 = vmatprep.subr.bf16.mxu0 0
  %546 = vmatpush1.bf16.msra.mxu0 %v413
  %547 = vmatprep.subr.bf16.mxu0 0
  %548 = vmatpush1.bf16.msra.mxu0 %v414
  %549 = vmatprep.subr.bf16.mxu0 0
  %550 = vmatpush1.bf16.msra.mxu0 %v415
  %551 = vmatprep.subr.bf16.mxu0 0
  %552 = vmatpush1.bf16.msra.mxu0 %v416
  %553 = vmatprep.subr.bf16.mxu0 0
  %554 = vmatpush1.bf16.msra.mxu0 %v417
  %555 = vmatprep.subr.bf16.mxu0 0
  %556 = vmatpush1.bf16.msra.mxu0 %v418
  %557 = vmatprep.subr.bf16.mxu0 0
  %558 = vmatpush1.bf16.msra.mxu0 %v419
  %559 = vmatprep.subr.bf16.mxu0 0
  %560 = vmatpush1.bf16.msra.mxu0 %v420
  %561 = vmatprep.mubr.bf16.mxu0 %v190
  %562 = vmatmul.mubr.bf16.gmra.mrb[0].mxu0 %v189
  %v563 = vpop.f32.mrb[0].mxu0
  %v564 = vadd.f32 %v524, %v563
  %v565 = vpop.f32.mrb[0].mxu0
  %v566 = vpop.f32.mrb[0].mxu0
  %v567 = vpop.f32.mrb[0].mxu0
  %568 = vdwg.mxu0
  %569 = vmatprep.subr.bf16.mxu0 0
  %570 = vmatpush1.bf16.msra.mxu0 %v421
  %571 = vmatprep.subr.bf16.mxu0 0
  %572 = vmatpush1.bf16.msra.mxu0 %v422
  %573 = vmatprep.subr.bf16.mxu0 0
  %574 = vmatpush1.bf16.msra.mxu0 %v423
  %575 = vmatprep.subr.bf16.mxu0 0
  %576 = vmatpush1.bf16.msra.mxu0 %v424
  %577 = vmatprep.subr.bf16.mxu0 0
  %578 = vmatpush1.bf16.msra.mxu0 %v425
  %579 = vmatprep.subr.bf16.mxu0 0
  %580 = vmatpush1.bf16.msra.mxu0 %v426
  %581 = vmatprep.subr.bf16.mxu0 0
  %582 = vmatpush1.bf16.msra.mxu0 %v427
  %583 = vmatprep.subr.bf16.mxu0 0
  %584 = vmatpush1.bf16.msra.mxu0 %v428
  %585 = vmatprep.subr.bf16.mxu0 0
  %586 = vmatpush1.bf16.msra.mxu0 %v429
  %587 = vmatprep.subr.bf16.mxu0 0
  %588 = vmatpush1.bf16.msra.mxu0 %v430
  %589 = vmatprep.subr.bf16.mxu0 0
  %590 = vmatpush1.bf16.msra.mxu0 %v431
  %591 = vmatprep.subr.bf16.mxu0 0
  %592 = vmatpush1.bf16.msra.mxu0 %v432
  %593 = vmatprep.subr.bf16.mxu0 0
  %594 = vmatpush1.bf16.msra.mxu0 %v433
  %595 = vmatprep.subr.bf16.mxu0 0
  %596 = vmatpush1.bf16.msra.mxu0 %v434
  %597 = vmatprep.subr.bf16.mxu0 0
  %598 = vmatpush1.bf16.msra.mxu0 %v435
  %599 = vmatprep.subr.bf16.mxu0 0
  %600 = vmatpush1.bf16.msra.mxu0 %v436
  %601 = vmatprep.mubr.bf16.mxu0 %v188
  %602 = vmatmul.mubr.bf16.gmra.mrb[0].mxu0 %v174
  %v603 = vpop.f32.mrb[0].mxu0
  %v604 = vadd.f32 %v564, %v603
  %v605 = vpop.f32.mrb[0].mxu0
  %v606 = vpop.f32.mrb[0].mxu0
  %v607 = vpop.f32.mrb[0].mxu0
  %608 = vdwg.mxu0
  %v609 = vlaneseq
  %v610 = vand.u32 %v609, 127
  %611 = vset.pattern.permute.xlu0 0
  %612 = vperm.xlu0 %611, %v40
  %v613 = vpop.permute.xlu0 %612
  %614 = vset.pattern.permute.xlu0 0
  %615 = vperm.xlu0 %614, %v41
  %v616 = vpop.permute.xlu0 %615
  %vm617 = vcmp.eq.s32.totalorder %v610, %v613
  %vm618 = vcmp.eq.s32.totalorder %v610, %v616
  %v619 = vsel %vm617, 1, 0
  %v620 = vsel %vm618, 1, 0
  %v621 = vcvt.s32.f32 %v619
  %v622 = vcvt.s32.f32 %v620
  %v623 = vpack.c.bf16 %v622, %v621
  %v624 = vlaneseq
  %v625 = vshrl.u32 %v624, 7
  %v626 = vadd.s32 %v625, 8
  %v627 = vmul.u32 %v610, 8
  %vm628 = vcmp.ge.s32.totalorder %v625, %v627
  %vm629 = vcmp.ge.s32.totalorder %v626, %v627
  %v630 = vadd.s32 %v610, 1
  %v631 = vmul.u32 %v630, 8
  %vm632 = vcmp.lt.s32.totalorder %v625, %v631
  %vm633 = vcmp.lt.s32.totalorder %v626, %v631
  %vm634 = vmand %vm628, %vm632
  %vm635 = vmand %vm629, %vm633
  %v636 = vsel %vm634, 1, 0
  %v637 = vsel %vm635, 1, 0
  %v638 = vcvt.s32.f32 %v636
  %v639 = vcvt.s32.f32 %v637
  %v640 = vpack.c.bf16 %v639, %v638
  %v641 = vpack.c.bf16 %v604, %v604
  %vm642 = vcmask 15360
  %v644 = vsel %vm642, %v640, 0
  %vm646 = vcmask 1040384
  %v648 = vsel %vm646, %v641, 0
  %650 = vmatprep.subr.bf16.mxu0 0
  %651 = vmatpush1.bf16.msra.mxu0 %v648
  %652 = vmatprep.subr.bf16.mxu0 0
  %653 = vmatpush1.bf16.msra.mxu0 0
  %654 = vmatprep.subr.bf16.mxu0 0
  %655 = vmatpush1.bf16.msra.mxu0 0
  %656 = vmatprep.subr.bf16.mxu0 0
  %657 = vmatpush1.bf16.msra.mxu0 0
  %658 = vmatprep.subr.bf16.mxu0 0
  %659 = vmatpush1.bf16.msra.mxu0 0
  %660 = vmatprep.subr.bf16.mxu0 0
  %661 = vmatpush1.bf16.msra.mxu0 0
  %662 = vmatprep.subr.bf16.mxu0 0
  %663 = vmatpush1.bf16.msra.mxu0 0
  %664 = vmatprep.subr.bf16.mxu0 0
  %665 = vmatpush1.bf16.msra.mxu0 0
  %666 = vmatprep.subr.bf16.mxu0 0
  %667 = vmatpush1.bf16.msra.mxu0 0
  %668 = vmatprep.subr.bf16.mxu0 0
  %669 = vmatpush1.bf16.msra.mxu0 0
  %670 = vmatprep.subr.bf16.mxu0 0
  %671 = vmatpush1.bf16.msra.mxu0 0
  %672 = vmatprep.subr.bf16.mxu0 0
  %673 = vmatpush1.bf16.msra.mxu0 0
  %674 = vmatprep.subr.bf16.mxu0 0
  %675 = vmatpush1.bf16.msra.mxu0 0
  %676 = vmatprep.subr.bf16.mxu0 0
  %677 = vmatpush1.bf16.msra.mxu0 0
  %678 = vmatprep.subr.bf16.mxu0 0
  %679 = vmatpush1.bf16.msra.mxu0 0
  %680 = vmatprep.subr.bf16.mxu0 0
  %681 = vmatpush1.bf16.msra.mxu0 0
  %682 = vmatprep.mubr.bf16.mxu0 0
  %683 = vmatmul.mubr.bf16.gmra.mrb[0].mxu0 %v644
  %v684 = vpop.f32.mrb[0].mxu0
  %v685 = vadd.f32 0.0, %v684
  %v686 = vpop.f32.mrb[0].mxu0
  %v687 = vpop.f32.mrb[0].mxu0
  %v688 = vadd.f32 0.0, %v687
  %v689 = vpop.f32.mrb[0].mxu0
  %690 = vdwg.mxu0
  %v699 = vunpack.c.l.b16 %v25
  %v700 = vunpack.c.l.b16 %v26
  %v701 = vunpack.c.l.b16 %v27
  %v702 = vunpack.c.l.b16 %v28
  %v703 = vunpack.c.l.b16 %v29
  %v704 = vunpack.c.l.b16 %v30
  %v705 = vunpack.c.l.b16 %v31
  %v706 = vunpack.c.l.b16 %v32
  %v707 = vpack.c.b16 %v700, %v699
  %v708 = vpack.c.b16 %v702, %v701
  %v709 = vpack.c.b16 %v704, %v703
  %v710 = vpack.c.b16 %v706, %v705
  %711 = vrot.lane.b32.xlu0 %v707, 32
  %v712 = vpop.permute.xlu0 %711
  %713 = vrot.lane.b32.xlu0 %v708, 32
  %v714 = vpop.permute.xlu0 %713
  %715 = vrot.lane.b32.xlu0 %v709, 32
  %v716 = vpop.permute.xlu0 %715
  %717 = vrot.lane.b32.xlu0 %v710, 32
  %v718 = vpop.permute.xlu0 %717
  %vm723 = vcmask 523264
  %v725 = vsel %vm723, %v623, 0
  %727 = vmatprep.subr.bf16.mxu0 0
  %728 = vmatpush1.bf16.msra.mxu0 %v712
  %729 = vmatprep.subr.bf16.mxu0 0
  %730 = vmatpush1.bf16.msra.mxu0 %v714
  %731 = vmatprep.subr.bf16.mxu0 0
  %732 = vmatpush1.bf16.msra.mxu0 %v716
  %733 = vmatprep.subr.bf16.mxu0 0
  %734 = vmatpush1.bf16.msra.mxu0 %v718
  %735 = vmatprep.subr.bf16.mxu0 0
  %736 = vmatpush1.bf16.msra.mxu0 0
  %737 = vmatprep.subr.bf16.mxu0 0
  %738 = vmatpush1.bf16.msra.mxu0 0
  %739 = vmatprep.subr.bf16.mxu0 0
  %740 = vmatpush1.bf16.msra.mxu0 0
  %741 = vmatprep.subr.bf16.mxu0 0
  %742 = vmatpush1.bf16.msra.mxu0 0
  %743 = vmatprep.subr.bf16.mxu0 0
  %744 = vmatpush1.bf16.msra.mxu0 0
  %745 = vmatprep.subr.bf16.mxu0 0
  %746 = vmatpush1.bf16.msra.mxu0 0
  %747 = vmatprep.subr.bf16.mxu0 0
  %748 = vmatpush1.bf16.msra.mxu0 0
  %749 = vmatprep.subr.bf16.mxu0 0
  %750 = vmatpush1.bf16.msra.mxu0 0
  %751 = vmatprep.subr.bf16.mxu0 0
  %752 = vmatpush1.bf16.msra.mxu0 0
  %753 = vmatprep.subr.bf16.mxu0 0
  %754 = vmatpush1.bf16.msra.mxu0 0
  %755 = vmatprep.subr.bf16.mxu0 0
  %756 = vmatpush1.bf16.msra.mxu0 0
  %757 = vmatprep.subr.bf16.mxu0 0
  %758 = vmatpush1.bf16.msra.mxu0 0
  %759 = vmatprep.mubr.bf16.mxu0 0
  %760 = vmatmul.mubr.bf16.gmra.mrb[0].mxu0 %v725
  %v761 = vpop.f32.mrb[0].mxu0
  %v762 = vadd.f32 %v685, %v761
  %v763 = vpop.f32.mrb[0].mxu0
  %v764 = vpop.f32.mrb[0].mxu0
  %v765 = vadd.f32 %v688, %v764
  %v766 = vpop.f32.mrb[0].mxu0
  %767 = vdwg.mxu0
  %v768 = vpack.c.bf16 %v765, %v762
  %v769 = vpack.c.bf16 %v34, %v33
  %v770 = vpack.c.bf16 %v36, %v35
  %vm771 = vcmask 261120
  %v773 = vsel %vm771, %v768, 0
  %775 = vmatprep.subr.bf16.mxu0 0
  %776 = vmatpush1.bf16.msra.mxu0 %v769
  %777 = vmatprep.subr.bf16.mxu0 0
  %778 = vmatpush1.bf16.msra.mxu0 %v770
  %779 = vmatprep.subr.bf16.mxu0 0
  %780 = vmatpush1.bf16.msra.mxu0 0
  %781 = vmatprep.subr.bf16.mxu0 0
  %782 = vmatpush1.bf16.msra.mxu0 0
  %783 = vmatprep.subr.bf16.mxu0 0
  %784 = vmatpush1.bf16.msra.mxu0 0
  %785 = vmatprep.subr.bf16.mxu0 0
  %786 = vmatpush1.bf16.msra.mxu0 0
  %787 = vmatprep.subr.bf16.mxu0 0
  %788 = vmatpush1.bf16.msra.mxu0 0
  %789 = vmatprep.subr.bf16.mxu0 0
  %790 = vmatpush1.bf16.msra.mxu0 0
  %791 = vmatprep.subr.bf16.mxu0 0
  %792 = vmatpush1.bf16.msra.mxu0 0
  %793 = vmatprep.subr.bf16.mxu0 0
  %794 = vmatpush1.bf16.msra.mxu0 0
  %795 = vmatprep.subr.bf16.mxu0 0
  %796 = vmatpush1.bf16.msra.mxu0 0
  %797 = vmatprep.subr.bf16.mxu0 0
  %798 = vmatpush1.bf16.msra.mxu0 0
  %799 = vmatprep.subr.bf16.mxu0 0
  %800 = vmatpush1.bf16.msra.mxu0 0
  %801 = vmatprep.subr.bf16.mxu0 0
  %802 = vmatpush1.bf16.msra.mxu0 0
  %803 = vmatprep.subr.bf16.mxu0 0
  %804 = vmatpush1.bf16.msra.mxu0 0
  %805 = vmatprep.subr.bf16.mxu0 0
  %806 = vmatpush1.bf16.msra.mxu0 0
  %807 = vmatprep.mubr.bf16.mxu0 0
  %808 = vmatmul.mubr.bf16.gmra.mrb[0].mxu0 %v773
  %v809 = vpop.f32.mrb[0].mxu0
  %v810 = vadd.f32 0.0, %v809
  %v811 = vpop.f32.mrb[0].mxu0
  %v812 = vpop.f32.mrb[0].mxu0
  %v813 = vadd.f32 0.0, %v812
  %v814 = vpop.f32.mrb[0].mxu0
  %815 = vdwg.mxu0
  %v816 = vpack.c.bf16 %v813, %v810
  %v817 = vpack.c.bf16 %v37, %v37
  %819 = vrot.lane.b32.xlu0 %v817, 124
  %v820 = vpop.permute.xlu0 %819
  %vm821 = vcmask 31744
  %v823 = vsel %vm821, %v816, 0
  %vm825 = vcmask 1041408
  %v827 = vsel %vm825, %v820, 0
  %829 = vmatprep.subr.bf16.mxu0 0
  %830 = vmatpush1.bf16.msra.mxu0 %v827
  %831 = vmatprep.subr.bf16.mxu0 0
  %832 = vmatpush1.bf16.msra.mxu0 0
  %833 = vmatprep.subr.bf16.mxu0 0
  %834 = vmatpush1.bf16.msra.mxu0 0
  %835 = vmatprep.subr.bf16.mxu0 0
  %836 = vmatpush1.bf16.msra.mxu0 0
  %837 = vmatprep.subr.bf16.mxu0 0
  %838 = vmatpush1.bf16.msra.mxu0 0
  %839 = vmatprep.subr.bf16.mxu0 0
  %840 = vmatpush1.bf16.msra.mxu0 0
  %841 = vmatprep.subr.bf16.mxu0 0
  %842 = vmatpush1.bf16.msra.mxu0 0
  %843 = vmatprep.subr.bf16.mxu0 0
  %844 = vmatpush1.bf16.msra.mxu0 0
  %845 = vmatprep.subr.bf16.mxu0 0
  %846 = vmatpush1.bf16.msra.mxu0 0
  %847 = vmatprep.subr.bf16.mxu0 0
  %848 = vmatpush1.bf16.msra.mxu0 0
  %849 = vmatprep.subr.bf16.mxu0 0
  %850 = vmatpush1.bf16.msra.mxu0 0
  %851 = vmatprep.subr.bf16.mxu0 0
  %852 = vmatpush1.bf16.msra.mxu0 0
  %853 = vmatprep.subr.bf16.mxu0 0
  %854 = vmatpush1.bf16.msra.mxu0 0
  %855 = vmatprep.subr.bf16.mxu0 0
  %856 = vmatpush1.bf16.msra.mxu0 0
  %857 = vmatprep.subr.bf16.mxu0 0
  %858 = vmatpush1.bf16.msra.mxu0 0
  %859 = vmatprep.subr.bf16.mxu0 0
  %860 = vmatpush1.bf16.msra.mxu0 0
  %861 = vmatprep.mubr.bf16.mxu0 0
  %862 = vmatmul.mubr.bf16.gmra.mrb[0].mxu0 %v823
  %v863 = vpop.f32.mrb[0].mxu0
  %v864 = vadd.f32 0.0, %v863
  %v865 = vpop.f32.mrb[0].mxu0
  %v866 = vpop.f32.mrb[0].mxu0
  %v867 = vadd.f32 0.0, %v866
  %v868 = vpop.f32.mrb[0].mxu0
  %869 = vdwg.mxu0
  %v870 = vmul.f32 %v864, 2.0
  %v871 = vmul.f32 %v867, 2.0
  %v876 = vunpack.c.l.b16 %v21
  %v877 = vunpack.c.l.b16 %v22
  %v878 = vunpack.c.l.b16 %v23
  %v879 = vunpack.c.l.b16 %v24
  %v880 = vpack.c.b16 %v877, %v876
  %v881 = vpack.c.b16 %v879, %v878
  %884 = vmatprep.subr.bf16.mxu0 0
  %885 = vmatpush1.bf16.msra.mxu0 %v880
  %886 = vmatprep.subr.bf16.mxu0 0
  %887 = vmatpush1.bf16.msra.mxu0 %v881
  %888 = vmatprep.subr.bf16.mxu0 0
  %889 = vmatpush1.bf16.msra.mxu0 0
  %890 = vmatprep.subr.bf16.mxu0 0
  %891 = vmatpush1.bf16.msra.mxu0 0
  %892 = vmatprep.subr.bf16.mxu0 0
  %893 = vmatpush1.bf16.msra.mxu0 0
  %894 = vmatprep.subr.bf16.mxu0 0
  %895 = vmatpush1.bf16.msra.mxu0 0
  %896 = vmatprep.subr.bf16.mxu0 0
  %897 = vmatpush1.bf16.msra.mxu0 0
  %898 = vmatprep.subr.bf16.mxu0 0
  %899 = vmatpush1.bf16.msra.mxu0 0
  %900 = vmatprep.subr.bf16.mxu0 0
  %901 = vmatpush1.bf16.msra.mxu0 0
  %902 = vmatprep.subr.bf16.mxu0 0
  %903 = vmatpush1.bf16.msra.mxu0 0
  %904 = vmatprep.subr.bf16.mxu0 0
  %905 = vmatpush1.bf16.msra.mxu0 0
  %906 = vmatprep.subr.bf16.mxu0 0
  %907 = vmatpush1.bf16.msra.mxu0 0
  %908 = vmatprep.subr.bf16.mxu0 0
  %909 = vmatpush1.bf16.msra.mxu0 0
  %910 = vmatprep.subr.bf16.mxu0 0
  %911 = vmatpush1.bf16.msra.mxu0 0
  %912 = vmatprep.subr.bf16.mxu0 0
  %913 = vmatpush1.bf16.msra.mxu0 0
  %914 = vmatprep.subr.bf16.mxu0 0
  %915 = vmatpush1.bf16.msra.mxu0 0
  %916 = vmatprep.mubr.bf16.mxu0 0
  %917 = vmatmul.mubr.bf16.gmra.mrb[0].mxu0 %v773
  %v918 = vpop.f32.mrb[0].mxu0
  %v919 = vadd.f32 %v870, %v918
  %v920 = vpop.f32.mrb[0].mxu0
  %v921 = vpop.f32.mrb[0].mxu0
  %v922 = vadd.f32 %v871, %v921
  %v923 = vpop.f32.mrb[0].mxu0
  %924 = vdwg.mxu0
  %v925 = vlaneseq
  %v926 = vshrl.u32 %v925, 7
  %v927 = vsub.s32 0, %v926
  %v928 = vrot.slane %v39, %v927
  %930 = vrot.lane.b32.xlu0 %v928, 124
  %v931 = vpop.permute.xlu0 %930
  %v933 = vadd.f32 %v919, %v931
  %v934 = vadd.f32 %v922, %v931
  %v935 = vmul.f32 %v933, %v933
  %v936 = vmul.f32 %v934, %v934
  %v937 = vmul.f32 %v933, %v935
  %v938 = vmul.f32 %v934, %v936
  %v939 = vmul.f32 %v937, 0.044715
  %v940 = vmul.f32 %v938, 0.044715
  %v941 = vadd.f32 %v933, %v939
  %v942 = vadd.f32 %v934, %v940
  %v943 = vmul.f32 %v941, 0.7978846
  %v944 = vmul.f32 %v942, 0.7978846
  %v945 = vtanh.pop %v943
  %v946 = vtanh.pop %v944
  %v947 = vadd.f32 %v945, 1.0
  %v948 = vadd.f32 %v946, 1.0
  %v949 = vmul.f32 %v947, 0.5
  %v950 = vmul.f32 %v948, 0.5
  %v951 = vmul.f32 %v933, %v949
  %v952 = vmul.f32 %v934, %v950
  %v953 = vpack.c.bf16 %v952, %v951
  %954 = vrot.lane.b32.xlu0 %v880, 96
  %v955 = vpop.permute.xlu0 %954
  %956 = vrot.lane.b32.xlu0 %v881, 96
  %v957 = vpop.permute.xlu0 %956
  %v961 = vsel %vm771, %v953, 0
  %963 = vmatprep.subr.bf16.mxu0 0
  %964 = vmatpush1.bf16.msra.mxu0 %v955
  %965 = vmatprep.subr.bf16.mxu0 0
  %966 = vmatpush1.bf16.msra.mxu0 %v957
  %967 = vmatprep.subr.bf16.mxu0 0
  %968 = vmatpush1.bf16.msra.mxu0 0
  %969 = vmatprep.subr.bf16.mxu0 0
  %970 = vmatpush1.bf16.msra.mxu0 0
  %971 = vmatprep.subr.bf16.mxu0 0
  %972 = vmatpush1.bf16.msra.mxu0 0
  %973 = vmatprep.subr.bf16.mxu0 0
  %974 = vmatpush1.bf16.msra.mxu0 0
  %975 = vmatprep.subr.bf16.mxu0 0
  %976 = vmatpush1.bf16.msra.mxu0 0
  %977 = vmatprep.subr.bf16.mxu0 0
  %978 = vmatpush1.bf16.msra.mxu0 0
  %979 = vmatprep.subr.bf16.mxu0 0
  %980 = vmatpush1.bf16.msra.mxu0 0
  %981 = vmatprep.subr.bf16.mxu0 0
  %982 = vmatpush1.bf16.msra.mxu0 0
  %983 = vmatprep.subr.bf16.mxu0 0
  %984 = vmatpush1.bf16.msra.mxu0 0
  %985 = vmatprep.subr.bf16.mxu0 0
  %986 = vmatpush1.bf16.msra.mxu0 0
  %987 = vmatprep.subr.bf16.mxu0 0
  %988 = vmatpush1.bf16.msra.mxu0 0
  %989 = vmatprep.subr.bf16.mxu0 0
  %990 = vmatpush1.bf16.msra.mxu0 0
  %991 = vmatprep.subr.bf16.mxu0 0
  %992 = vmatpush1.bf16.msra.mxu0 0
  %993 = vmatprep.subr.bf16.mxu0 0
  %994 = vmatpush1.bf16.msra.mxu0 0
  %995 = vmatprep.mubr.bf16.mxu0 0
  %996 = vmatmul.mubr.bf16.gmra.mrb[0].mxu0 %v961
  %v997 = vpop.f32.mrb[0].mxu0
  %v998 = vadd.f32 0.0, %v997
  %v999 = vpop.f32.mrb[0].mxu0
  %v1000 = vpop.f32.mrb[0].mxu0
  %v1001 = vadd.f32 0.0, %v1000
  %v1002 = vpop.f32.mrb[0].mxu0
  %1003 = vdwg.mxu0
  %v1004 = vsel %vm723, %v998, -inf
  %1005 = vmax.xlane.f32.xlu0 %v1004
  %v1006 = vpop.xlane.xlu0 %1005
  %v1007 = vsel %vm723, %v1001, -inf
  %1008 = vmax.xlane.f32.xlu0 %v1007
  %v1009 = vpop.xlane.xlu0 %1008
  %v1010 = vsub.f32 %v998, %v1006
  %v1011 = vsub.f32 %v1001, %v1009
  %v1012 = vmul.f32 %v1010, 1.442695
  %v1013 = vpow.pop %v1012
  %v1014 = vmul.f32 %v1011, 1.442695
  %v1015 = vpow.pop %v1014
  %v1016 = vsel %vm723, %v1013, 0.0
  %1017 = vadd.xlane.f32.xlu0 %v1016
  %v1018 = vpop.xlane.xlu0 %1017
  %v1019 = vsel %vm723, %v1015, 0.0
  %1020 = vadd.xlane.f32.xlu0 %v1019
  %v1021 = vpop.xlane.xlu0 %1020
  %v1022 = vlog2.pop %v1018
  %v1023 = vmul.f32 %v1022, 0.6931472
  %v1024 = vlog2.pop %v1021
  %v1025 = vmul.f32 %v1024, 0.6931472
  %v1026 = vadd.f32 %v1006, %v1023
  %v1027 = vadd.f32 %v1009, %v1025
  %v1028 = vsub.s32 %v631, 1
  %vm1029 = vcmp.eq.s32.totalorder %v625, %v1028
  %vm1030 = vcmp.eq.s32.totalorder %v626, %v1028
  %v1031 = vsel %vm1029, 1, 0
  %v1032 = vsel %vm1030, 1, 0
  %v1033 = vsel %vm642, %v1031, 0
  %v1034 = vand.u32 %v1033, 65535
  %v1035 = vshrl.u32 %v1033, 16
  %v1036 = vcvt.s32.f32 %v1034
  %v1037 = vcvt.s32.f32 %v1035
  %1038 = vadd.xlane.f32.xlu0 %v1036
  %v1039 = vpop.xlane.xlu0 %1038
  %1040 = vadd.xlane.f32.xlu0 %v1037
  %v1041 = vpop.xlane.xlu0 %1040
  %v1042 = vcvt.f32.s32 %v1039
  %v1043 = vcvt.f32.s32 %v1041
  %v1044 = vshll.u32 %v1043, 16
  %v1045 = vadd.s32 %v1044, %v1042
  %v1046 = vsel %vm642, %v1032, 0
  %v1047 = vand.u32 %v1046, 65535
  %v1048 = vshrl.u32 %v1046, 16
  %v1049 = vcvt.s32.f32 %v1047
  %v1050 = vcvt.s32.f32 %v1048
  %1051 = vadd.xlane.f32.xlu0 %v1049
  %v1052 = vpop.xlane.xlu0 %1051
  %1053 = vadd.xlane.f32.xlu0 %v1050
  %v1054 = vpop.xlane.xlu0 %1053
  %v1055 = vcvt.f32.s32 %v1052
  %v1056 = vcvt.f32.s32 %v1054
  %v1057 = vshll.u32 %v1056, 16
  %v1058 = vadd.s32 %v1057, %v1055
  %v1059 = vsub.s32 1, %v1045
  %v1060 = vsub.s32 1, %v1058
  %v1061 = vcvt.s32.f32 %v1059
  %v1062 = vcvt.s32.f32 %v1060
  %v1063 = vadd.s32 %v625, 1
  %v1064 = vadd.s32 %v626, 1
  %vm1065 = vcmp.eq.s32.totalorder %v610, %v1063
  %vm1066 = vcmp.eq.s32.totalorder %v610, %v1064
  %v1067 = vsel %vm1065, %v1061, 0.0
  %v1068 = vsel %vm1066, %v1062, 0.0
  %v1069 = vpack.c.bf16 %v1068, %v1067
  %vm1070 = vcmask 130048
  %v1072 = vsel %vm1070, %v1069, 0
  %1074 = vmatprep.subr.bf16.mxu0 0
  %1075 = vmatpush1.bf16.msra.mxu0 %v623
  %1076 = vmatprep.subr.bf16.mxu0 0
  %1077 = vmatpush1.bf16.msra.mxu0 0
  %1078 = vmatprep.subr.bf16.mxu0 0
  %1079 = vmatpush1.bf16.msra.mxu0 0
  %1080 = vmatprep.subr.bf16.mxu0 0
  %1081 = vmatpush1.bf16.msra.mxu0 0
  %1082 = vmatprep.subr.bf16.mxu0 0
  %1083 = vmatpush1.bf16.msra.mxu0 0
  %1084 = vmatprep.subr.bf16.mxu0 0
  %1085 = vmatpush1.bf16.msra.mxu0 0
  %1086 = vmatprep.subr.bf16.mxu0 0
  %1087 = vmatpush1.bf16.msra.mxu0 0
  %1088 = vmatprep.subr.bf16.mxu0 0
  %1089 = vmatpush1.bf16.msra.mxu0 0
  %1090 = vmatprep.subr.bf16.mxu0 0
  %1091 = vmatpush1.bf16.msra.mxu0 0
  %1092 = vmatprep.subr.bf16.mxu0 0
  %1093 = vmatpush1.bf16.msra.mxu0 0
  %1094 = vmatprep.subr.bf16.mxu0 0
  %1095 = vmatpush1.bf16.msra.mxu0 0
  %1096 = vmatprep.subr.bf16.mxu0 0
  %1097 = vmatpush1.bf16.msra.mxu0 0
  %1098 = vmatprep.subr.bf16.mxu0 0
  %1099 = vmatpush1.bf16.msra.mxu0 0
  %1100 = vmatprep.subr.bf16.mxu0 0
  %1101 = vmatpush1.bf16.msra.mxu0 0
  %1102 = vmatprep.subr.bf16.mxu0 0
  %1103 = vmatpush1.bf16.msra.mxu0 0
  %1104 = vmatprep.subr.bf16.mxu0 0
  %1105 = vmatpush1.bf16.msra.mxu0 0
  %1106 = vmatprep.mubr.bf16.mxu0 0
  %1107 = vmatmul.mubr.bf16.gmra.mrb[0].mxu0 %v1072
  %v1108 = vpop.f32.mrb[0].mxu0
  %v1109 = vadd.f32 0.0, %v1108
  %v1110 = vpop.f32.mrb[0].mxu0
  %v1111 = vpop.f32.mrb[0].mxu0
  %v1112 = vadd.f32 0.0, %v1111
  %v1113 = vpop.f32.mrb[0].mxu0
  %1114 = vdwg.mxu0
  %v1115 = vmul.f32 %v1109, %v998
  %v1116 = vmul.f32 %v1112, %v1001
  %v1117 = vsel %vm723, %v1115, 0.0
  %1118 = vadd.xlane.f32.xlu0 %v1117
  %v1119 = vpop.xlane.xlu0 %1118
  %v1120 = vsel %vm723, %v1116, 0.0
  %1121 = vadd.xlane.f32.xlu0 %v1120
  %v1122 = vpop.xlane.xlu0 %1121
  %v1123 = vsel %vm723, %v1109, 0.0
  %1124 = vadd.xlane.f32.xlu0 %v1123
  %v1125 = vpop.xlane.xlu0 %1124
  %v1126 = vsel %vm723, %v1112, 0.0
  %1127 = vadd.xlane.f32.xlu0 %v1126
  %v1128 = vpop.xlane.xlu0 %1127
  %vm1129 = vcmask 7168
  %v1130 = vsel %vm1129, %v1125, 0.0
  %v1131 = vsel %vm1129, %v1128, 0.0
  %v1132 = vadd.f32 %v1130, %v1131
  %1133 = vadd.xlane.f32.xlu0 %v1132
  %v1134 = vpop.xlane.xlu0 %1133
  %v1135 = vrot.slane %v1134, 4
  %v1136 = vadd.f32 %v1134, %v1135
  %v1137 = vrot.slane %v1136, 2
  %v1138 = vadd.f32 %v1136, %v1137
  %v1139 = vrot.slane %v1138, 1
  %v1140 = vadd.f32 %v1138, %v1139
  %s1141 = vtos %v1140
  %s1142 = smax.f32 %s1141, 1.0
  %v1143 = vsub.f32 %v1026, %v1119
  %v1144 = vsub.f32 %v1027, %v1122
  %v1145 = vmul.f32 %v1143, %v1125
  %v1146 = vmul.f32 %v1144, %v1128
  %v1147 = vsel %vm1129, %v1145, 0.0
  %v1148 = vsel %vm1129, %v1146, 0.0
  %v1149 = vadd.f32 %v1147, %v1148
  %1150 = vadd.xlane.f32.xlu0 %v1149
  %v1151 = vpop.xlane.xlu0 %1150
  %v1152 = vrot.slane %v1151, 4
  %v1153 = vadd.f32 %v1151, %v1152
  %v1154 = vrot.slane %v1153, 2
  %v1155 = vadd.f32 %v1153, %v1154
  %v1156 = vrot.slane %v1155, 1
  %v1157 = vadd.f32 %v1155, %v1156
  %s1158 = vtos %v1157
  %v1159 = vstv %s1142
  %v1160 = vrcp.pop %v1159
  %s1161 = vtos %v1160
  %s1162 = smul.f32 %s1158, %s1161
  %v1163 = vand.u32 2147483647, %v33
  %v1164 = vand.u32 2147483647, %v34
  %v1165 = vand.u32 2147483647, %v35
  %v1166 = vand.u32 2147483647, %v36
  %v1167 = vsel %vm821, %v1163, 0.0
  %v1168 = vsel %vm821, %v1164, 0.0
  %v1169 = vadd.f32 %v1167, %v1168
  %v1170 = vsel %vm821, %v1165, 0.0
  %v1171 = vadd.f32 %v1169, %v1170
  %v1172 = vsel %vm821, %v1166, 0.0
  %v1173 = vadd.f32 %v1171, %v1172
  %1174 = vadd.xlane.f32.xlu0 %v1173
  %v1175 = vpop.xlane.xlu0 %1174
  %v1176 = vrot.slane %v1175, 4
  %v1177 = vadd.f32 %v1175, %v1176
  %v1178 = vrot.slane %v1177, 2
  %v1179 = vadd.f32 %v1177, %v1178
  %v1180 = vrot.slane %v1179, 1
  %v1181 = vadd.f32 %v1179, %v1180
  %s1182 = vtos %v1181
  %v1183 = vand.u32 2147483647, %v37
  %1185 = vrot.lane.b32.xlu0 %v1183, 124
  %v1186 = vpop.permute.xlu0 %1185
  %vm1188 = vcmask 257024
  %v1189 = vsel %vm1188, %v1186, 0.0
  %1190 = vadd.xlane.f32.xlu0 %v1189
  %v1191 = vpop.xlane.xlu0 %1190
  %v1192 = vrot.slane %v1191, 4
  %v1193 = vadd.f32 %v1191, %v1192
  %v1194 = vrot.slane %v1193, 2
  %v1195 = vadd.f32 %v1193, %v1194
  %v1196 = vrot.slane %v1195, 1
  %v1197 = vadd.f32 %v1195, %v1196
  %s1198 = vtos %v1197
  %s1199 = sadd.f32 %s1182, %s1198
  %v1200 = vrcp.pop 256.0
  %s1201 = vtos %v1200
  %s1202 = smul.f32 %s1199, %s1201
  %s1203 = smul.f32 %s1202, 0.01
  %s1204 = sadd.f32 %s1162, %s1203
  %vm1205 = vcmp.eq.s32.totalorder %v610, 0
  %v1206 = vstv %s1204
  %v1207 = vsel %vm1205, %v1206, 0.0
  %vm1208 = vcmp.eq.s32.totalorder %v610, 1
  %v1209 = vstv %s1162
  %v1210 = vsel %vm1208, %v1209, 0.0
  %v1211 = vadd.f32 %v1207, %v1210
  %vm1212 = vcmp.eq.s32.totalorder %v610, 2
  %v1213 = vstv %s1202
  %v1214 = vsel %vm1212, %v1213, 0.0
  %v1215 = vadd.f32 %v1211, %v1214
  %1216 = vst [vmem:[%s5] sm:$0x1] %v1215
  // Predicated region
  $region22: #{_lambda_.1} parent=0 // pred_check
    _
  $region23: #{_lambda_.1} parent=0 // pred_check_branch
    %1218 = sbr.rel (0) target = $region25
  $region24: #{_lambda_.1} parent=0 // pred_region
    _
  $region25: #{_lambda_.1} parent=0 // pred_fallthru
    _
  // Predicated region
  $region26: #{_lambda_.1} parent=0 // pred_check
    _
  $region27: #{_lambda_.1} parent=0 // pred_check_branch
    %1220 = sbr.rel (0) target = $region29
  $region28: #{_lambda_.1} parent=0 // pred_region
    _
  $region29: #{_lambda_.1} parent=0 // pred_fallthru
    _

</llo_original>
